<compile_context>
chip_gen: v6e
topology: v6e:2x2x1
jax: 0.10.0
libtpu: 0.0.40
codegen_flags: <defaults>
</compile_context>

<pallas_src>
import functools

import jax
import jax.numpy as jnp
from jax.experimental import pallas as pl
from jax.experimental.pallas import tpu as pltpu

LAMBDA2 = 0.2   # multiplies loss_lpips, which is 0.0 on the 'l2' branch
LAMBDA3 = 0.001


def _loss_kernel(z_ref, w_ref, xgt_ref, out_ref, acc_ref, zcast_ref, *,
                 z_dim, inv_d, n_lane_chunks, w_resident):
    # z_ref:     (bt, Z+1)         f32    latent with ones column (resident per B tile)
    # w_ref:     resident: (nd, Z+1, td)  stream dtype, whole (bias-folded) W
    #            streamed: (Z+1, td)      stream dtype, one D tile
    # xgt_ref:   (bt, td)          stream dtype, flattened ground-truth tile
    # out_ref:   (bt, 1)           f32    per-sample vec_loss (written at last k)
    # acc_ref:   (bt, 128)         f32    lane-dense partial sum of diff**2
    # zcast_ref: (bt, Z+1)         stream dtype, z cast once per B tile
    k = pl.program_id(1)
    nk = pl.num_programs(1)

    @pl.when(k == 0)
    def _init():
        acc_ref[...] = jnp.zeros_like(acc_ref)
        # Hoisted cast: done once per B tile, not once per D tile.
        zcast_ref[...] = z_ref[...].astype(zcast_ref.dtype)

    if w_resident:
        w_tile = w_ref[k]                 # (Z+1, td), dynamic leading-dim index
    else:
        w_tile = w_ref[...]               # (Z+1, td), streamed block

    # --- netG tile: linear (+ folded bias) + tanh; MXU matmul, f32 accumulation ---
    x_hat = jnp.tanh(
        jnp.dot(zcast_ref[...], w_tile, preferred_element_type=jnp.float32)
    )                                     # (bt, td) f32

    # --- l2 distance: accumulate sum of squared diffs for this D tile ---
    diff = xgt_ref[...].astype(jnp.float32) - x_hat
    d2 = diff * diff

    # Lane-dense pairwise (tree) reduction of the 128-lane chunks: log-depth
    # chain of VALU adds instead of a serial dependency chain.
    chunks = [d2[:, c * 128:(c + 1) * 128] for c in range(n_lane_chunks)]
    while len(chunks) > 1:
        nxt = [a + b for a, b in zip(chunks[0::2], chunks[1::2])]
        if len(chunks) % 2:
            nxt.append(chunks[-1])
        chunks = nxt
    acc_ref[...] += chunks[0]

    # --- finalize: mean, norm penalty (computed exactly once), write out ---
    @pl.when(k == nk - 1)
    def _finalize():
        loss_l2 = jnp.sum(acc_ref[...], axis=1, keepdims=True) * inv_d    # (bt,1)
        z32 = z_ref[...]                                                  # f32, includes ones col
        norm = jnp.sum(z32 * z32, axis=1, keepdims=True) - 1.0            # subtract ones column
        norm_penalty = (norm - z_dim) ** 2
        # loss_lpips == 0.0 for distance='l2' => LAMBDA2 * lpips drops out.
        out_ref[...] = loss_l2 + LAMBDA3 * norm_penalty


def _pick_b_tile(Bp, max_b_tile, min_bt):
    cands = [t for t in (512, 256, 128, 64, 32, 16, 8)
             if min_bt <= t <= max_b_tile]
    # Prefer nb >= 2 so the "parallel" B axis spans both v7x TensorCores.
    for t in cands:
        if Bp % t == 0 and Bp // t >= 2:
            return t
    for t in cands:
        if Bp % t == 0:
            return t
    return Bp


def _pick_d_tile(Dp, bt, stream_bytes, max_d_tile):
    budget = 2 * 1024 * 1024   # per x_gt pipeline buffer
    for t in (2048, 1024, 512, 256, 128):
        if t > max_d_tile:
            continue
        if Dp % t == 0 and bt * t * stream_bytes <= budget:
            return t
    return 128                 # Dp is always a multiple of 128


def vaegan_loss(z, w, b, x_gt, *, z_dim, stream_dtype=jnp.bfloat16,
                w_resident_bytes=8 * 1024 * 1024,
                max_b_tile=512, max_d_tile=2048):
    """z: (B, z_dim), w: (z_dim, D), b: (D,), x_gt: (B, C, H, W) -> (B,) f32.

    bf16 streaming (default) halves W / x_gt HBM traffic at a small, documented
    accuracy cost; pass stream_dtype=jnp.float32 for a bit-faithful path.
    """
    B, Z = z.shape
    D = w.shape[1]
    assert b.shape == (D,)
    assert x_gt.shape[0] == B and x_gt.size == B * D

    # NCHW row-major flatten == torch .view(B, -1) ordering, so mean over
    # dims [1,2,3] equals mean over the flat last axis.
    x_flat = x_gt.reshape(B, D).astype(jnp.float32)

    # Fold the bias into the matmul: ones column on z, bias row on W.
    z_aug = jnp.concatenate(
        [z.astype(jnp.float32), jnp.ones((B, 1), jnp.float32)], axis=1)     # (B, Z+1)
    w_aug = jnp.concatenate(
        [w.astype(jnp.float32), b.reshape(1, D).astype(jnp.float32)], axis=0)  # (Z+1, D)
    Zp1 = Z + 1

    # Zero-pad D to a multiple of 128 (loss-neutral) -> lane-dense, pipelined D loop.
    Dp = ((D + 127) // 128) * 128
    if Dp != D:
        w_aug = jnp.pad(w_aug, ((0, 0), (0, Dp - D)))
        x_flat = jnp.pad(x_flat, ((0, 0), (0, Dp - D)))

    # Zero-pad B to a multiple of 16 (bf16 sublane packing); padded rows sliced off.
    Bp = ((B + 15) // 16) * 16
    if Bp != B:
        z_aug = jnp.pad(z_aug, ((0, Bp - B), (0, 0)))
        x_flat = jnp.pad(x_flat, ((0, Bp - B), (0, 0)))

    stream_bytes = jnp.dtype(stream_dtype).itemsize
    w_s = w_aug.astype(stream_dtype)
    x_s = x_flat.astype(stream_dtype)

    min_bt = 16 if stream_bytes < 4 else 8
    bt = _pick_b_tile(Bp, max_b_tile, min_bt)
    td = _pick_d_tile(Dp, bt, stream_bytes, max_d_tile)
    nb = Bp // bt
    nd = Dp // td

    # Keep W resident in VMEM when it is small enough: no per-B-tile re-streaming.
    w_resident = (Zp1 * Dp * stream_bytes) <= w_resident_bytes
    if w_resident:
        # (Z+1, Dp) -> (nd, Z+1, td): slice the k-th D tile with a cheap
        # dynamic leading-dim index inside the kernel.
        w_arg = w_s.reshape(Zp1, nd, td).transpose(1, 0, 2)
        w_spec = pl.BlockSpec((nd, Zp1, td), lambda i, k: (0, 0, 0))
    else:
        w_arg = w_s
        w_spec = pl.BlockSpec((Zp1, td), lambda i, k: (0, k))

    kernel = functools.partial(
        _loss_kernel,
        z_dim=float(z_dim),
        inv_d=1.0 / float(D),            # divide by the TRUE D, not the padded one
        n_lane_chunks=td // 128,
        w_resident=w_resident,
    )

    out = pl.pallas_call(
        kernel,
        out_shape=jax.ShapeDtypeStruct((Bp, 1), jnp.float32),
        grid=(nb, nd),                                    # reduction axis (D) last
        in_specs=[
            pl.BlockSpec((bt, Zp1), lambda i, k: (i, 0)),  # z: resident per B tile
            w_spec,                                        # W: resident or streamed
            pl.BlockSpec((bt, td), lambda i, k: (i, k)),   # x_gt tile
        ],
        out_specs=pl.BlockSpec((bt, 1), lambda i, k: (i, 0)),
        scratch_shapes=[
            pltpu.VMEM((bt, 128), jnp.float32),            # lane-dense accumulator
            pltpu.VMEM((bt, Zp1), stream_dtype),           # z cast once per B tile
        ],
        compiler_params=pltpu.CompilerParams(
            dimension_semantics=("parallel", "arbitrary"),
            vmem_limit_bytes=48 * 1024 * 1024,
        ),
    )(z_aug, w_arg, x_s)
    return out[:B, 0]


def _reference(z, w, b, x_gt, *, z_dim):
    B = z.shape[0]
    x_hat = jnp.tanh(z @ w + b[None, :]).reshape(x_gt.shape)
    loss_l2 = jnp.mean((x_gt - x_hat) ** 2, axis=(1, 2, 3))
    norm = jnp.sum(z.reshape(B, z_dim) ** 2, axis=1)
    return loss_l2 + LAMBDA3 * (norm - z_dim) ** 2


if __name__ == "__main__":
    # Small shapes consistent with the module: latent z -> image (B, C, H, W)
    B, Z_DIM = 2, 100
    C, H, W = 4, 16, 16
    D = C * H * W

    key = jax.random.PRNGKey(0)
    kz, kx, kw, kb = jax.random.split(key, 4)

    z = jax.random.normal(kz, (B, Z_DIM), dtype=jnp.float32)
    x_gt = jax.random.uniform(kx, (B, C, H, W), dtype=jnp.float32) * 2.0 - 1.0

    # Deterministic synthetic generator parameters (linear netG)
    w = jax.random.normal(kw, (Z_DIM, D), dtype=jnp.float32) * 0.05
    b = jax.random.normal(kb, (D,), dtype=jnp.float32) * 0.01

    ref = _reference(z, w, b, x_gt, z_dim=Z_DIM)

    # 1) f32 streaming, resident W, single D tile: tight check vs reference.
    out_f32 = jax.block_until_ready(
        vaegan_loss(z, w, b, x_gt, z_dim=Z_DIM, stream_dtype=jnp.float32))
    assert out_f32.shape == (B,)
    assert jnp.allclose(out_f32, ref, rtol=1e-3, atol=1e-3), (out_f32, ref)

    # 2) f32, forced multi-tile grid (nb=2, nd=2) exercising the STREAMED-W path.
    out_tiled = jax.block_until_ready(
        vaegan_loss(z, w, b, x_gt, z_dim=Z_DIM, stream_dtype=jnp.float32,
                    w_resident_bytes=0, max_b_tile=8, max_d_tile=512))
    assert jnp.allclose(out_tiled, ref, rtol=1e-3, atol=1e-3), (out_tiled, ref)

    # 3) f32, forced multi-D-tile with RESIDENT W (exercises w_ref[k] dynamic index
    #    and the per-B-tile accumulator / z-cast re-init).
    out_res = jax.block_until_ready(
        vaegan_loss(z, w, b, x_gt, z_dim=Z_DIM, stream_dtype=jnp.float32,
                    max_d_tile=512))
    assert jnp.allclose(out_res, ref, rtol=1e-3, atol=1e-3), (out_res, ref)

    # 4) bf16 streaming path (default): halves W / x_gt HBM traffic; looser check
    #    because the f32 reference does not quantize weights or targets.
    out_bf16 = jax.block_until_ready(vaegan_loss(z, w, b, x_gt, z_dim=Z_DIM))
    assert out_bf16.shape == (B,)
    assert jnp.allclose(out_bf16, ref, rtol=2e-2, atol=2e-2), (out_bf16, ref)

    print("KERNEL_OK")
</pallas_src>

<mosaic_0001>
module attributes {stable_mosaic.version = 11 : i64} {
  func.func @_loss_kernel(%arg0: i32, %arg1: i32, %arg2: memref<8x101xf32, #tpu.memory_space<vmem>>, %arg3: memref<1x101x1024xf32, #tpu.memory_space<vmem>>, %arg4: memref<8x1024xf32, #tpu.memory_space<vmem>>, %arg5: memref<8x1xf32, #tpu.memory_space<vmem>>, %arg6: memref<8x128xf32, #tpu.memory_space<vmem>>, %arg7: memref<8x101xf32, #tpu.memory_space<vmem>>) attributes {dimension_semantics = [#tpu.dimension_semantics<parallel>, #tpu.dimension_semantics<arbitrary>], iteration_bounds = array<i64: 2, 1>, scalar_prefetch = 0 : i64, scratch_operands = 2 : i64, tpu.core_type = #tpu.core_type<tc>, window_params = [{transform_indices = @transform_0, window_bounds = array<i64: 8, 101>}, {pipeline_mode = #tpu.pipeline_mode<synchronous>, transform_indices = @transform_1, window_bounds = array<i64: 1, 101, 1024>}, {transform_indices = @transform_2, window_bounds = array<i64: 8, 1024>}, {transform_indices = @transform_3, window_bounds = array<i64: 8, 1>}]} {
    %c0_i32 = arith.constant 0 : i32
    %0 = arith.cmpi eq, %arg1, %c0_i32 : i32
    %1 = arith.extui %0 : i1 to i32
    %c0_i32_0 = arith.constant 0 : i32
    %2 = arith.cmpi ne, %1, %c0_i32_0 : i32
    scf.if %2 {
      %cst_12 = arith.constant 0.000000e+00 : f32
      %33 = vector.broadcast %cst_12 : f32 to vector<8x128xf32>
      %c0_13 = arith.constant 0 : index
      %c0_14 = arith.constant 0 : index
      %34 = vector.load %arg6[%c0_13, %c0_14] : memref<8x128xf32, #tpu.memory_space<vmem>>, vector<8x128xf32>
      tpu.vector_store %arg6[%c0_13, %c0_14], %33 {strides = array<i32>} : memref<8x128xf32, #tpu.memory_space<vmem>>, vector<8x128xf32>,
      %c0_15 = arith.constant 0 : index
      %c0_16 = arith.constant 0 : index
      %35 = vector.load %arg2[%c0_15, %c0_16] : memref<8x101xf32, #tpu.memory_space<vmem>>, vector<8x101xf32>
      %c0_17 = arith.constant 0 : index
      %c0_18 = arith.constant 0 : index
      %36 = vector.load %arg7[%c0_17, %c0_18] : memref<8x101xf32, #tpu.memory_space<vmem>>, vector<8x101xf32>
      tpu.vector_store %arg7[%c0_17, %c0_18], %35 {strides = array<i32>} : memref<8x101xf32, #tpu.memory_space<vmem>>, vector<8x101xf32>,
    } else {
    }
    %3 = arith.index_cast %arg1 : i32 to index
    %c0 = arith.constant 0 : index
    %c0_1 = arith.constant 0 : index
    %4 = vector.load %arg3[%3, %c0, %c0_1] : memref<1x101x1024xf32, #tpu.memory_space<vmem>>, vector<1x101x1024xf32>
    %5 = vector.shape_cast %4 : vector<1x101x1024xf32> to vector<101x1024xf32>
    %c0_2 = arith.constant 0 : index
    %c0_3 = arith.constant 0 : index
    %6 = vector.load %arg7[%c0_2, %c0_3] : memref<8x101xf32, #tpu.memory_space<vmem>>, vector<8x101xf32>
    %cst = arith.constant dense<0.000000e+00> : vector<8x1024xf32>
    %7 = tpu.matmul %6, %5, %cst {dimension_numbers = #tpu.dot_dimension_numbers<[1], [0], [0], [1], [0, 0, 1, 1], [], []>} : vector<8x101xf32>, vector<101x1024xf32>, vector<8x1024xf32> -> vector<8x1024xf32>
    %8 = math.tanh %7 : vector<8x1024xf32>
    %c0_4 = arith.constant 0 : index
    %c0_5 = arith.constant 0 : index
    %9 = vector.load %arg4[%c0_4, %c0_5] : memref<8x1024xf32, #tpu.memory_space<vmem>>, vector<8x1024xf32>
    %10 = arith.subf %9, %8 : vector<8x1024xf32>
    %11 = arith.mulf %10, %10 : vector<8x1024xf32>
    %12 = vector.extract_strided_slice %11 {offsets = [0, 0], sizes = [8, 128], strides = [1, 1]} : vector<8x1024xf32> to vector<8x128xf32>
    %13 = vector.extract_strided_slice %11 {offsets = [0, 128], sizes = [8, 128], strides = [1, 1]} : vector<8x1024xf32> to vector<8x128xf32>
    %14 = vector.extract_strided_slice %11 {offsets = [0, 256], sizes = [8, 128], strides = [1, 1]} : vector<8x1024xf32> to vector<8x128xf32>
    %15 = vector.extract_strided_slice %11 {offsets = [0, 384], sizes = [8, 128], strides = [1, 1]} : vector<8x1024xf32> to vector<8x128xf32>
    %16 = vector.extract_strided_slice %11 {offsets = [0, 512], sizes = [8, 128], strides = [1, 1]} : vector<8x1024xf32> to vector<8x128xf32>
    %17 = vector.extract_strided_slice %11 {offsets = [0, 640], sizes = [8, 128], strides = [1, 1]} : vector<8x1024xf32> to vector<8x128xf32>
    %18 = vector.extract_strided_slice %11 {offsets = [0, 768], sizes = [8, 128], strides = [1, 1]} : vector<8x1024xf32> to vector<8x128xf32>
    %19 = vector.extract_strided_slice %11 {offsets = [0, 896], sizes = [8, 128], strides = [1, 1]} : vector<8x1024xf32> to vector<8x128xf32>
    %20 = arith.addf %12, %13 : vector<8x128xf32>
    %21 = arith.addf %14, %15 : vector<8x128xf32>
    %22 = arith.addf %16, %17 : vector<8x128xf32>
    %23 = arith.addf %18, %19 : vector<8x128xf32>
    %24 = arith.addf %20, %21 : vector<8x128xf32>
    %25 = arith.addf %22, %23 : vector<8x128xf32>
    %26 = arith.addf %24, %25 : vector<8x128xf32>
    %c0_6 = arith.constant 0 : index
    %c0_7 = arith.constant 0 : index
    %27 = vector.load %arg6[%c0_6, %c0_7] : memref<8x128xf32, #tpu.memory_space<vmem>>, vector<8x128xf32>
    %28 = arith.addf %27, %26 : vector<8x128xf32>
    %c0_8 = arith.constant 0 : index
    %c0_9 = arith.constant 0 : index
    %29 = vector.load %arg6[%c0_8, %c0_9] : memref<8x128xf32, #tpu.memory_space<vmem>>, vector<8x128xf32>
    tpu.vector_store %arg6[%c0_8, %c0_9], %28 {strides = array<i32>} : memref<8x128xf32, #tpu.memory_space<vmem>>, vector<8x128xf32>,
    %c0_i32_10 = arith.constant 0 : i32
    %30 = arith.cmpi eq, %arg1, %c0_i32_10 : i32
    %31 = arith.extui %30 : i1 to i32
    %c0_i32_11 = arith.constant 0 : i32
    %32 = arith.cmpi ne, %31, %c0_i32_11 : i32
    scf.if %32 {
      %c0_12 = arith.constant 0 : index
      %c0_13 = arith.constant 0 : index
      %33 = vector.load %arg6[%c0_12, %c0_13] : memref<8x128xf32, #tpu.memory_space<vmem>>, vector<8x128xf32>
      %cst_14 = arith.constant dense<0.000000e+00> : vector<8xf32>
      %34 = vector.multi_reduction <add>, %33, %cst_14 [1] : vector<8x128xf32> to vector<8xf32>
      %35 = vector.shape_cast %34 : vector<8xf32> to vector<8x1xf32>
      %cst_15 = arith.constant 9.765625E-4 : f32
      %36 = vector.broadcast %cst_15 : f32 to vector<8x1xf32>
      %37 = arith.mulf %35, %36 : vector<8x1xf32>
      %c0_16 = arith.constant 0 : index
      %c0_17 = arith.constant 0 : index
      %38 = vector.load %arg2[%c0_16, %c0_17] : memref<8x101xf32, #tpu.memory_space<vmem>>, vector<8x101xf32>
      %39 = arith.mulf %38, %38 : vector<8x101xf32>
      %cst_18 = arith.constant dense<0.000000e+00> : vector<8xf32>
      %40 = vector.multi_reduction <add>, %39, %cst_18 [1] : vector<8x101xf32> to vector<8xf32>
      %41 = vector.shape_cast %40 : vector<8xf32> to vector<8x1xf32>
      %cst_19 = arith.constant 1.000000e+00 : f32
      %42 = vector.broadcast %cst_19 : f32 to vector<8x1xf32>
      %43 = arith.subf %41, %42 : vector<8x1xf32>
      %cst_20 = arith.constant 1.000000e+02 : f32
      %44 = vector.broadcast %cst_20 : f32 to vector<8x1xf32>
      %45 = arith.subf %43, %44 : vector<8x1xf32>
      %46 = arith.mulf %45, %45 : vector<8x1xf32>
      %cst_21 = arith.constant 1.000000e-03 : f32
      %47 = vector.broadcast %cst_21 : f32 to vector<8x1xf32>
      %48 = arith.mulf %47, %46 : vector<8x1xf32>
      %49 = arith.addf %37, %48 : vector<8x1xf32>
      %c0_22 = arith.constant 0 : index
      %c0_23 = arith.constant 0 : index
      %50 = vector.load %arg5[%c0_22, %c0_23] : memref<8x1xf32, #tpu.memory_space<vmem>>, vector<8x1xf32>
      tpu.vector_store %arg5[%c0_22, %c0_23], %49 {strides = array<i32>} : memref<8x1xf32, #tpu.memory_space<vmem>>, vector<8x1xf32>,
    } else {
    }
    return
  }
  func.func @transform_0(%arg0: i32, %arg1: i32) -> (i32, i32) {
    %c0_i32 = arith.constant 0 : i32
    %c0_i32_0 = arith.constant 0 : i32
    return %arg0, %c0_i32 : i32, i32
  }
  func.func @transform_1(%arg0: i32, %arg1: i32) -> (i32, i32, i32) {
    %c0_i32 = arith.constant 0 : i32
    %c0_i32_0 = arith.constant 0 : i32
    %c0_i32_1 = arith.constant 0 : i32
    %c0_i32_2 = arith.constant 0 : i32
    return %c0_i32, %c0_i32_0, %c0_i32_1 : i32, i32, i32
  }
  func.func @transform_2(%arg0: i32, %arg1: i32) -> (i32, i32) {
    %c0_i32 = arith.constant 0 : i32
    return %arg0, %arg1 : i32, i32
  }
  func.func @transform_3(%arg0: i32, %arg1: i32) -> (i32, i32) {
    %c0_i32 = arith.constant 0 : i32
    %c0_i32_0 = arith.constant 0 : i32
    return %arg0, %c0_i32 : i32, i32
  }
}

</mosaic_0001>

<llo_original>
// kernel: tpu_custom_call.1
$region0: #{tpu_custom_call.1}
  #allocation0 [shape = 'u32[]', space=smem, size = 0x4, offset = 0x4, fixed_abs, tag = 'smem constant byte address 0x4 - core index']
  #allocation1 [shape = 'u32[144,128]{1,0:T(1,128)}', space=vmem, size = 0x12000, scoped, tag = 'internal scratch']
  #allocation2 [shape = 'f32[8,128]{1,0:T(8,128)}', space=vmem, size = 0x1000, scoped, tag = 'scratch operand']
  #allocation3 [shape = 'f32[8,101]{1,0:T(8,128)}', space=vmem, size = 0x1000, scoped, tag = 'scratch operand']
  %s0 = inlined_call_operand.vmem [shape: f32[16,101], index: 0, kind: input, shape index: {}]
  %s1 = inlined_call_operand.vmem [shape: f32[1,101,1024], index: 1, kind: input, shape index: {}]
  %s2 = inlined_call_operand.vmem [shape: f32[16,1024], index: 2, kind: input, shape index: {}]
  %s3 = inlined_call_operand.vmem [shape: f32[16,1], index: 3, kind: output, shape index: {}]
  %s4 = sld [smem:[#allocation0]]
  $region53: #{tpu_custom_call.1} parent=0
    _
  %s6 = ssub.s32 1, %s4
  %s7 = scalar_select 0, %s6, %s4
  loop: start=0, step=1, limit=4
  $region2: #{tpu_custom_call.1} parent=0 // loop_pre_header
    _
  $region3: #{tpu_custom_call.1} parent=0 // loop_header
    %s9 = sphi 0, %s13
    %p10 = scmp.ge.s32.totalorder %s9, 4
    %s16 = sphi 0, %s28
    %s17 = sphi 0, %s24
    %s18 = sphi 0, %s16
    %s19 = sphi 0, %s17
    %s20 = sphi 0, %s18
    %s21 = sphi 0, %s19
    %s31 = sphi 0, %s33
    %s34 = sphi 0, %s31
    %s35 = sphi 0, %s34
    %s51 = sphi 0, %s35
    %s55 = sphi 0, %s55
    %s57 = sphi 0, %s55
    %s58 = sphi 0, %s57
    %s72 = sphi 0, %s58
    %s80 = sphi 0, %s82
    %s83 = sphi 0, %s80
    %s84 = sphi 0, %s83
    %s100 = sphi 0, %s84
    %s106 = sphi 0, %s108
    %s109 = sphi 0, %s106
    %s110 = sphi 0, %s109
    %s126 = sphi 0, %s110
  $region4: #{tpu_custom_call.1} parent=0 // loop_header_branch
    %12 = sbr.rel (%p10) target = $region8
  $region5: #{tpu_custom_call.1} parent=0 // loop_body
    %s14 = ssub.s32 %s9, 1
    %s15 = ssub.s32 %s9, 2
    %s22 = sadd.s32 1, %s17
    %p23 = scmp.ge.s32.totalorder %s22, 1
    %s24 = scalar_select %p23, 0, %s22
    %s25 = sadd.s32 1, %s16
    %s26 = scalar_select %p23, %s25, %s16
    %p27 = scmp.ge.s32.totalorder %s26, 2
    %s28 = scalar_select %p27, 0, %s26
    %s29 = ssub.s32 %s16, %s28
    %p30 = scmp.eq.s32.totalorder %s29, 0
    %s32 = sadd.s32 %s31, 1
    %s33 = scalar_select %p30, %s31, %s32
    %p36 = pneg %p30
    %p37 = scmp.eq.s32.totalorder %s9, 1
    %p38 = por %p36, %p37
    %p39 = scmp.ne.s32.totalorder %s31, %s34
    %p40 = scmp.eq.s32.totalorder %s9, 0
    %p41 = por %p39, %p40
    %p42 = scmp.ne.s32.totalorder %s31, %s34
    %p43 = scmp.eq.s32.totalorder %s14, 1
    %p44 = por %p42, %p43
    %p45 = scmp.ne.s32.totalorder %s34, %s35
    %p46 = scmp.eq.s32.totalorder %s14, 0
    %p47 = por %p45, %p46
    %p48 = scmp.ne.s32.totalorder %s34, %s35
    %p49 = scmp.eq.s32.totalorder %s15, 1
    %p50 = por %p48, %p49
    %p52 = scmp.ne.s32.totalorder %s35, %s51
    %p53 = scmp.eq.s32.totalorder %s15, 0
    %p54 = por %p52, %p53
    %s56 = sadd.s32 %s55, 1
    %p59 = scmp.eq.s32.totalorder %s9, 1
    %p60 = scmp.ne.s32.totalorder %s55, %s57
    %p61 = scmp.eq.s32.totalorder %s9, 0
    %p62 = por %p60, %p61
    %p63 = scmp.ne.s32.totalorder %s55, %s57
    %p64 = scmp.eq.s32.totalorder %s14, 1
    %p65 = por %p63, %p64
    %p66 = scmp.ne.s32.totalorder %s57, %s58
    %p67 = scmp.eq.s32.totalorder %s14, 0
    %p68 = por %p66, %p67
    %p69 = scmp.ne.s32.totalorder %s57, %s58
    %p70 = scmp.eq.s32.totalorder %s15, 1
    %p71 = por %p69, %p70
    %p73 = scmp.ne.s32.totalorder %s58, %s72
    %p74 = scmp.eq.s32.totalorder %s15, 0
    %p75 = por %p73, %p74
    %s76 = ssub.s32 %s16, %s28
    %s77 = ssub.s32 %s17, %s24
    %s78 = sor.u32 %s76, %s77
    %p79 = scmp.eq.s32.totalorder %s78, 0
    %s81 = sadd.s32 %s80, 1
    %s82 = scalar_select %p79, %s80, %s81
    %p85 = pneg %p79
    %p86 = scmp.eq.s32.totalorder %s9, 1
    %p87 = por %p85, %p86
    %p88 = scmp.ne.s32.totalorder %s80, %s83
    %p89 = scmp.eq.s32.totalorder %s9, 0
    %p90 = por %p88, %p89
    %p91 = scmp.ne.s32.totalorder %s80, %s83
    %p92 = scmp.eq.s32.totalorder %s14, 1
    %p93 = por %p91, %p92
    %p94 = scmp.ne.s32.totalorder %s83, %s84
    %p95 = scmp.eq.s32.totalorder %s14, 0
    %p96 = por %p94, %p95
    %p97 = scmp.ne.s32.totalorder %s83, %s84
    %p98 = scmp.eq.s32.totalorder %s15, 1
    %p99 = por %p97, %p98
    %p101 = scmp.ne.s32.totalorder %s84, %s100
    %p102 = scmp.eq.s32.totalorder %s15, 0
    %p103 = por %p101, %p102
    %s104 = ssub.s32 %s16, %s28
    %p105 = scmp.eq.s32.totalorder %s104, 0
    %s107 = sadd.s32 %s106, 1
    %s108 = scalar_select %p105, %s106, %s107
    %p111 = pneg %p105
    %p112 = scmp.eq.s32.totalorder %s9, 1
    %p113 = por %p111, %p112
    %p114 = scmp.ne.s32.totalorder %s106, %s109
    %p115 = scmp.eq.s32.totalorder %s9, 0
    %p116 = por %p114, %p115
    %p117 = scmp.ne.s32.totalorder %s106, %s109
    %p118 = scmp.eq.s32.totalorder %s14, 1
    %p119 = por %p117, %p118
    %p120 = scmp.ne.s32.totalorder %s109, %s110
    %p121 = scmp.eq.s32.totalorder %s14, 0
    %p122 = por %p120, %p121
    %p123 = scmp.ne.s32.totalorder %s109, %s110
    %p124 = scmp.eq.s32.totalorder %s15, 1
    %p125 = por %p123, %p124
    %p127 = scmp.ne.s32.totalorder %s110, %s126
    %p128 = scmp.eq.s32.totalorder %s15, 0
    %p129 = por %p127, %p128
    %p130 = scmp.le.s32.totalorder 1, %s9
    %p131 = scmp.lt.s32.totalorder %s9, 3
    %p132 = pnand %p130, %p131
    %p133 = pneg %p132
    // Predicated region
    $region9: #{tpu_custom_call.1} parent=5 // pred_check
      _
    $region10: #{tpu_custom_call.1} parent=5 // pred_check_branch
      %135 = sbr.rel (%p132) target = $region12
    $region11: #{tpu_custom_call.1} parent=5 // pred_region
      %s136 = ssub.s32 %s9, 1
      // Predicated region
      $region13: #{tpu_custom_call.1} parent=11 // pred_check
        %p137 = pneg %p68
      $region14: #{tpu_custom_call.1} parent=11 // pred_check_branch
        %139 = sbr.rel (%p137) target = $region16
      $region15: #{tpu_custom_call.1} parent=11 // pred_region
        _
      $region16: #{tpu_custom_call.1} parent=11 // pred_fallthru
        _
    $region12: #{tpu_custom_call.1} parent=5 // pred_fallthru
      _
    %p140 = scmp.lt.s32.totalorder %s9, 2
    // Predicated region
    $region17: #{tpu_custom_call.1} parent=5 // pred_check
      %p141 = pneg %p140
    $region18: #{tpu_custom_call.1} parent=5 // pred_check_branch
      %143 = sbr.rel (%p141) target = $region20
    $region19: #{tpu_custom_call.1} parent=5 // pred_region
      // Predicated region
      $region21: #{tpu_custom_call.1} parent=19 // pred_check
        %p144 = pneg %p41
      $region22: #{tpu_custom_call.1} parent=19 // pred_check_branch
        %146 = sbr.rel (%p144) target = $region24
      $region23: #{tpu_custom_call.1} parent=19 // pred_region
        %p147 = scmp.lt.s32.totalorder %s16, 1
        %s148 = scalar_select %p147, %s16, 1
        %s149 = smul.addr %s148, 8
        %s150 = scalar_lea.vmem %s0, %s149
      $region24: #{tpu_custom_call.1} parent=19 // pred_fallthru
        _
      // Predicated region
      $region25: #{tpu_custom_call.1} parent=19 // pred_check
        %p151 = pneg %p90
      $region26: #{tpu_custom_call.1} parent=19 // pred_check_branch
        %153 = sbr.rel (%p151) target = $region28
      $region27: #{tpu_custom_call.1} parent=19 // pred_region
        %s154 = smul.u32 8, %s17
        %p155 = scmp.lt.s32.totalorder %s16, 1
        %s156 = scalar_select %p155, %s16, 1
        %p157 = scmp.lt.s32.totalorder %s154, 7
        %s158 = scalar_select %p157, %s154, 7
        %s159 = smul.addr %s156, 8
        %s160 = sadd.s32 %s158, %s159
        %s161 = smul.addr %s160, 8
        %s162 = scalar_lea.vmem %s2, %s161
        %s163 = smul.u32 8, %s17
      $region28: #{tpu_custom_call.1} parent=19 // pred_fallthru
        _
    $region20: #{tpu_custom_call.1} parent=5 // pred_fallthru
      _
    %p164 = scmp.le.s32.totalorder 1, %s9
    %p165 = scmp.lt.s32.totalorder %s9, 3
    %p166 = pnand %p164, %p165
    %p167 = pneg %p166
    // Predicated region
    $region29: #{tpu_custom_call.1} parent=5 // pred_check
      _
    $region30: #{tpu_custom_call.1} parent=5 // pred_check_branch
      %169 = sbr.rel (%p166) target = $region32
    $region31: #{tpu_custom_call.1} parent=5 // pred_region
      %s170 = ssub.s32 %s9, 1
      %p171 = scmp.lt.s32.totalorder %s18, 1
      %s172 = scalar_select %p171, %s18, 1
      %s173 = smul.addr %s172, 8
      %s174 = scalar_lea.vmem %s0, %s173
      %p175 = pneg %p47
      %p176 = pneg %p44
      %p177 = pneg %p68
      %p178 = pneg %p65
      %s179 = smul.u32 8, %s19
      %p180 = scmp.lt.s32.totalorder %s18, 1
      %s181 = scalar_select %p180, %s18, 1
      %p182 = scmp.lt.s32.totalorder %s179, 7
      %s183 = scalar_select %p182, %s179, 7
      %s184 = smul.addr %s181, 8
      %s185 = sadd.s32 %s183, %s184
      %s186 = smul.addr %s185, 8
      %s187 = scalar_lea.vmem %s2, %s186
      %p188 = pneg %p96
      %p189 = pneg %p93
      %p190 = pneg %p122
      %p191 = pneg %p119
      %p192 = scmp.lt.s32.totalorder %s18, 1
      %s193 = scalar_select %p192, %s18, 1
      %s194 = smul.addr %s193, 8
      %s195 = scalar_lea.vmem %s3, %s194
      %p196 = scmp.lt.s32.totalorder %s18, 1
      %s197 = scalar_select %p196, %s18, 1
      %s198 = smul.addr %s197, 8
      %s199 = scalar_lea.vmem %s0, %s198
      %s200 = smul.u32 8, %s19
      %p201 = scmp.lt.s32.totalorder %s18, 1
      %s202 = scalar_select %p201, %s18, 1
      %p203 = scmp.lt.s32.totalorder %s200, 7
      %s204 = scalar_select %p203, %s200, 7
      %s205 = smul.addr %s202, 8
      %s206 = sadd.s32 %s204, %s205
      %s207 = smul.addr %s206, 8
      %s208 = scalar_lea.vmem %s2, %s207
      %s209 = smul.u32 8, %s19
      %p210 = scmp.lt.s32.totalorder %s18, 1
      %s211 = scalar_select %p210, %s18, 1
      %s212 = smul.addr %s211, 8
      %s213 = scalar_lea.vmem %s3, %s212
      %p214 = scmp.eq.s32.totalorder %s19, 0
      // Predicated region
      $region33: #{tpu_custom_call.1} parent=31 // pred_check
        %p215 = pneg %p214
      $region34: #{tpu_custom_call.1} parent=31 // pred_check_branch
        %217 = sbr.rel (%p215) target = $region36
      $region35: #{tpu_custom_call.1} parent=31 // pred_region
        %218 = vst [vmem:[#allocation2] sm:$0xff] 0.0
        %v219 = vld [vmem:[%s199] sm:$0xff]
        %vm220 = vcmask 826368
        %221 = vst.msk [vmem:[#allocation3] sm:$0xff] %vm220, %v219
      $region36: #{tpu_custom_call.1} parent=31 // pred_fallthru
        _
      %s222 = smul.u32 %s19, 104
      %s223 = smul.addr %s222, 8
      %s224 = scalar_lea.vmem %s1, %s223
      %v225 = vld [vmem:[%s224] sm:$0xff]
      %v226 = vld [vmem:[%s224 + $0x8] sm:$0xff]
      %v227 = vld [vmem:[%s224 + $0x10] sm:$0xff]
      %v228 = vld [vmem:[%s224 + $0x18] sm:$0xff]
      %v229 = vld [vmem:[%s224 + $0x20] sm:$0xff]
      %v230 = vld [vmem:[%s224 + $0x28] sm:$0xff]
      %v231 = vld [vmem:[%s224 + $0x30] sm:$0xff]
      %v232 = vld [vmem:[%s224 + $0x38] sm:$0xff]
      %v233 = vld [vmem:[%s224 + $0x40] sm:$0xff]
      %v234 = vld [vmem:[%s224 + $0x48] sm:$0xff]
      %v235 = vld [vmem:[%s224 + $0x50] sm:$0xff]
      %v236 = vld [vmem:[%s224 + $0x58] sm:$0xff]
      %v237 = vld [vmem:[%s224 + $0x60] sm:$0xff]
      %v238 = vld [vmem:[%s224 + $0x68] sm:$0xff]
      %v239 = vld [vmem:[%s224 + $0x70] sm:$0xff]
      %v240 = vld [vmem:[%s224 + $0x78] sm:$0xff]
      %v241 = vld [vmem:[%s224 + $0x80] sm:$0xff]
      %v242 = vld [vmem:[%s224 + $0x88] sm:$0xff]
      %v243 = vld [vmem:[%s224 + $0x90] sm:$0xff]
      %v244 = vld [vmem:[%s224 + $0x98] sm:$0xff]
      %v245 = vld [vmem:[%s224 + $0xa0] sm:$0xff]
      %v246 = vld [vmem:[%s224 + $0xa8] sm:$0xff]
      %v247 = vld [vmem:[%s224 + $0xb0] sm:$0xff]
      %v248 = vld [vmem:[%s224 + $0xb8] sm:$0xff]
      %v249 = vld [vmem:[%s224 + $0xc0] sm:$0xff]
      %v250 = vld [vmem:[%s224 + $0xc8] sm:$0xff]
      %v251 = vld [vmem:[%s224 + $0xd0] sm:$0xff]
      %v252 = vld [vmem:[%s224 + $0xd8] sm:$0xff]
      %v253 = vld [vmem:[%s224 + $0xe0] sm:$0xff]
      %v254 = vld [vmem:[%s224 + $0xe8] sm:$0xff]
      %v255 = vld [vmem:[%s224 + $0xf0] sm:$0xff]
      %v256 = vld [vmem:[%s224 + $0xf8] sm:$0xff]
      %v257 = vld [vmem:[%s224 + $0x100] sm:$0xff]
      %v258 = vld [vmem:[%s224 + $0x108] sm:$0xff]
      %v259 = vld [vmem:[%s224 + $0x110] sm:$0xff]
      %v260 = vld [vmem:[%s224 + $0x118] sm:$0xff]
      %v261 = vld [vmem:[%s224 + $0x120] sm:$0xff]
      %v262 = vld [vmem:[%s224 + $0x128] sm:$0xff]
      %v263 = vld [vmem:[%s224 + $0x130] sm:$0xff]
      %v264 = vld [vmem:[%s224 + $0x138] sm:$0xff]
      %v265 = vld [vmem:[%s224 + $0x140] sm:$0xff]
      %v266 = vld [vmem:[%s224 + $0x148] sm:$0xff]
      %v267 = vld [vmem:[%s224 + $0x150] sm:$0xff]
      %v268 = vld [vmem:[%s224 + $0x158] sm:$0xff]
      %v269 = vld [vmem:[%s224 + $0x160] sm:$0xff]
      %v270 = vld [vmem:[%s224 + $0x168] sm:$0xff]
      %v271 = vld [vmem:[%s224 + $0x170] sm:$0xff]
      %v272 = vld [vmem:[%s224 + $0x178] sm:$0xff]
      %v273 = vld [vmem:[%s224 + $0x180] sm:$0xff]
      %v274 = vld [vmem:[%s224 + $0x188] sm:$0xff]
      %v275 = vld [vmem:[%s224 + $0x190] sm:$0xff]
      %v276 = vld [vmem:[%s224 + $0x198] sm:$0xff]
      %v277 = vld [vmem:[%s224 + $0x1a0] sm:$0xff]
      %v278 = vld [vmem:[%s224 + $0x1a8] sm:$0xff]
      %v279 = vld [vmem:[%s224 + $0x1b0] sm:$0xff]
      %v280 = vld [vmem:[%s224 + $0x1b8] sm:$0xff]
      %v281 = vld [vmem:[%s224 + $0x1c0] sm:$0xff]
      %v282 = vld [vmem:[%s224 + $0x1c8] sm:$0xff]
      %v283 = vld [vmem:[%s224 + $0x1d0] sm:$0xff]
      %v284 = vld [vmem:[%s224 + $0x1d8] sm:$0xff]
      %v285 = vld [vmem:[%s224 + $0x1e0] sm:$0xff]
      %v286 = vld [vmem:[%s224 + $0x1e8] sm:$0xff]
      %v287 = vld [vmem:[%s224 + $0x1f0] sm:$0xff]
      %v288 = vld [vmem:[%s224 + $0x1f8] sm:$0xff]
      %v289 = vld [vmem:[%s224 + $0x200] sm:$0xff]
      %v290 = vld [vmem:[%s224 + $0x208] sm:$0xff]
      %v291 = vld [vmem:[%s224 + $0x210] sm:$0xff]
      %v292 = vld [vmem:[%s224 + $0x218] sm:$0xff]
      %v293 = vld [vmem:[%s224 + $0x220] sm:$0xff]
      %v294 = vld [vmem:[%s224 + $0x228] sm:$0xff]
      %v295 = vld [vmem:[%s224 + $0x230] sm:$0xff]
      %v296 = vld [vmem:[%s224 + $0x238] sm:$0xff]
      %v297 = vld [vmem:[%s224 + $0x240] sm:$0xff]
      %v298 = vld [vmem:[%s224 + $0x248] sm:$0xff]
      %v299 = vld [vmem:[%s224 + $0x250] sm:$0xff]
      %v300 = vld [vmem:[%s224 + $0x258] sm:$0xff]
      %v301 = vld [vmem:[%s224 + $0x260] sm:$0xff]
      %v302 = vld [vmem:[%s224 + $0x268] sm:$0xff]
      %v303 = vld [vmem:[%s224 + $0x270] sm:$0xff]
      %v304 = vld [vmem:[%s224 + $0x278] sm:$0xff]
      %v305 = vld [vmem:[%s224 + $0x280] sm:$0xff]
      %v306 = vld [vmem:[%s224 + $0x288] sm:$0xff]
      %v307 = vld [vmem:[%s224 + $0x290] sm:$0xff]
      %v308 = vld [vmem:[%s224 + $0x298] sm:$0xff]
      %v309 = vld [vmem:[%s224 + $0x2a0] sm:$0xff]
      %v310 = vld [vmem:[%s224 + $0x2a8] sm:$0xff]
      %v311 = vld [vmem:[%s224 + $0x2b0] sm:$0xff]
      %v312 = vld [vmem:[%s224 + $0x2b8] sm:$0xff]
      %v313 = vld [vmem:[%s224 + $0x2c0] sm:$0xff]
      %v314 = vld [vmem:[%s224 + $0x2c8] sm:$0xff]
      %v315 = vld [vmem:[%s224 + $0x2d0] sm:$0xff]
      %v316 = vld [vmem:[%s224 + $0x2d8] sm:$0xff]
      %v317 = vld [vmem:[%s224 + $0x2e0] sm:$0xff]
      %v318 = vld [vmem:[%s224 + $0x2e8] sm:$0xff]
      %v319 = vld [vmem:[%s224 + $0x2f0] sm:$0xff]
      %v320 = vld [vmem:[%s224 + $0x2f8] sm:$0xff]
      %v321 = vld [vmem:[%s224 + $0x300] sm:$0x1f]
      %v322 = vld [vmem:[%s224 + $0x308] sm:$0x1f]
      %v323 = vld [vmem:[%s224 + $0x310] sm:$0x1f]
      %v324 = vld [vmem:[%s224 + $0x318] sm:$0x1f]
      %v325 = vld [vmem:[%s224 + $0x320] sm:$0x1f]
      %v326 = vld [vmem:[%s224 + $0x328] sm:$0x1f]
      %v327 = vld [vmem:[%s224 + $0x330] sm:$0x1f]
      %v328 = vld [vmem:[%s224 + $0x338] sm:$0x1f]
      %v329 = vld [vmem:[#allocation3] sm:$0xff]
      %vm330 = vcmask 826368
      %v332 = vsel %vm330, %v329, 0
      %vm334 = vcmask 1044480
      %v336 = vsel %vm334, %v321, 0
      %v339 = vsel %vm334, %v322, 0
      %v342 = vsel %vm334, %v323, 0
      %v345 = vsel %vm334, %v324, 0
      %v348 = vsel %vm334, %v325, 0
      %v351 = vsel %vm334, %v326, 0
      %v354 = vsel %vm334, %v327, 0
      %v357 = vsel %vm334, %v328, 0
      %359 = vmatprep.subr.mxu0 0.0
      %360 = vmatpush1.msra.mxu0 0.0
      %361 = vmatprep.subr.mxu0 0.0
      %362 = vmatpush1.msra.mxu0 0.0
      %363 = vmatprep.subr.mxu0 0.0
      %364 = vmatpush1.msra.mxu0 0.0
      %365 = vmatprep.subr.mxu0 %v339
      %366 = vmatpush1.msra.mxu0 %v336
      %367 = vmatprep.subr.mxu0 %v314
      %368 = vmatpush1.msra.mxu0 %v313
      %369 = vmatprep.subr.mxu0 %v306
      %370 = vmatpush1.msra.mxu0 %v305
      %371 = vmatprep.subr.mxu0 %v298
      %372 = vmatpush1.msra.mxu0 %v297
      %373 = vmatprep.subr.mxu0 %v290
      %374 = vmatpush1.msra.mxu0 %v289
      %375 = vmatprep.subr.mxu0 %v282
      %376 = vmatpush1.msra.mxu0 %v281
      %377 = vmatprep.subr.mxu0 %v274
      %378 = vmatpush1.msra.mxu0 %v273
      %379 = vmatprep.subr.mxu0 %v266
      %380 = vmatpush1.msra.mxu0 %v265
      %381 = vmatprep.subr.mxu0 %v258
      %382 = vmatpush1.msra.mxu0 %v257
      %383 = vmatprep.subr.mxu0 %v250
      %384 = vmatpush1.msra.mxu0 %v249
      %385 = vmatprep.subr.mxu0 %v242
      %386 = vmatpush1.msra.mxu0 %v241
      %387 = vmatprep.subr.mxu0 %v234
      %388 = vmatpush1.msra.mxu0 %v233
      %389 = vmatprep.subr.mxu0 %v226
      %390 = vmatpush1.msra.mxu0 %v225
      %391 = vmatprep.subr.mxu0 0.0
      %392 = vmatpush2.msra.mxu0 0.0
      %393 = vmatprep.subr.mxu0 0.0
      %394 = vmatpush2.msra.mxu0 0.0
      %395 = vmatprep.subr.mxu0 0.0
      %396 = vmatpush2.msra.mxu0 0.0
      %397 = vmatprep.subr.mxu0 0.0
      %398 = vmatpush2.msra.mxu0 0.0
      %399 = vmatprep.subr.mxu0 0.0
      %400 = vmatpush2.msra.mxu0 0.0
      %401 = vmatprep.subr.mxu0 0.0
      %402 = vmatpush2.msra.mxu0 0.0
      %403 = vmatprep.subr.mxu0 0.0
      %404 = vmatpush2.msra.mxu0 0.0
      %405 = vmatprep.subr.mxu0 0.0
      %406 = vmatpush2.msra.mxu0 0.0
      %407 = vmatprep.subr.mxu0 0.0
      %408 = vmatpush2.msra.mxu0 0.0
      %409 = vmatprep.subr.mxu0 0.0
      %410 = vmatpush2.msra.mxu0 0.0
      %411 = vmatprep.subr.mxu0 0.0
      %412 = vmatpush2.msra.mxu0 0.0
      %413 = vmatprep.subr.mxu0 0.0
      %414 = vmatpush2.msra.mxu0 0.0
      %415 = vmatprep.subr.mxu0 0.0
      %416 = vmatpush2.msra.mxu0 0.0
      %417 = vmatprep.subr.mxu0 0.0
      %418 = vmatpush2.msra.mxu0 0.0
      %419 = vmatprep.subr.mxu0 0.0
      %420 = vmatpush2.msra.mxu0 0.0
      %421 = vmatprep.subr.mxu0 0.0
      %422 = vmatpush2.msra.mxu0 0.0
      %423 = vmatprep.mubr.f32.mxu0 0.0
      %424 = vmatmul.mubr.f32.gmra.mxu0 %v332
      %v425 = vpop.f32.mrf.mxu0
      %v426 = vadd.f32 0.0, %v425
      %v427 = vpop.f32.mrf.mxu0
      %v428 = vadd.f32 0.0, %v427
      %429 = vdwg.mxu0
      %430 = vmatprep.subr.mxu0 0.0
      %431 = vmatpush1.msra.mxu0 0.0
      %432 = vmatprep.subr.mxu0 0.0
      %433 = vmatpush1.msra.mxu0 0.0
      %434 = vmatprep.subr.mxu0 0.0
      %435 = vmatpush1.msra.mxu0 0.0
      %436 = vmatprep.subr.mxu0 %v345
      %437 = vmatpush1.msra.mxu0 %v342
      %438 = vmatprep.subr.mxu0 %v316
      %439 = vmatpush1.msra.mxu0 %v315
      %440 = vmatprep.subr.mxu0 %v308
      %441 = vmatpush1.msra.mxu0 %v307
      %442 = vmatprep.subr.mxu0 %v300
      %443 = vmatpush1.msra.mxu0 %v299
      %444 = vmatprep.subr.mxu0 %v292
      %445 = vmatpush1.msra.mxu0 %v291
      %446 = vmatprep.subr.mxu0 %v284
      %447 = vmatpush1.msra.mxu0 %v283
      %448 = vmatprep.subr.mxu0 %v276
      %449 = vmatpush1.msra.mxu0 %v275
      %450 = vmatprep.subr.mxu0 %v268
      %451 = vmatpush1.msra.mxu0 %v267
      %452 = vmatprep.subr.mxu0 %v260
      %453 = vmatpush1.msra.mxu0 %v259
      %454 = vmatprep.subr.mxu0 %v252
      %455 = vmatpush1.msra.mxu0 %v251
      %456 = vmatprep.subr.mxu0 %v244
      %457 = vmatpush1.msra.mxu0 %v243
      %458 = vmatprep.subr.mxu0 %v236
      %459 = vmatpush1.msra.mxu0 %v235
      %460 = vmatprep.subr.mxu0 %v228
      %461 = vmatpush1.msra.mxu0 %v227
      %462 = vmatprep.subr.mxu0 0.0
      %463 = vmatpush2.msra.mxu0 0.0
      %464 = vmatprep.subr.mxu0 0.0
      %465 = vmatpush2.msra.mxu0 0.0
      %466 = vmatprep.subr.mxu0 0.0
      %467 = vmatpush2.msra.mxu0 0.0
      %468 = vmatprep.subr.mxu0 0.0
      %469 = vmatpush2.msra.mxu0 0.0
      %470 = vmatprep.subr.mxu0 0.0
      %471 = vmatpush2.msra.mxu0 0.0
      %472 = vmatprep.subr.mxu0 0.0
      %473 = vmatpush2.msra.mxu0 0.0
      %474 = vmatprep.subr.mxu0 0.0
      %475 = vmatpush2.msra.mxu0 0.0
      %476 = vmatprep.subr.mxu0 0.0
      %477 = vmatpush2.msra.mxu0 0.0
      %478 = vmatprep.subr.mxu0 0.0
      %479 = vmatpush2.msra.mxu0 0.0
      %480 = vmatprep.subr.mxu0 0.0
      %481 = vmatpush2.msra.mxu0 0.0
      %482 = vmatprep.subr.mxu0 0.0
      %483 = vmatpush2.msra.mxu0 0.0
      %484 = vmatprep.subr.mxu0 0.0
      %485 = vmatpush2.msra.mxu0 0.0
      %486 = vmatprep.subr.mxu0 0.0
      %487 = vmatpush2.msra.mxu0 0.0
      %488 = vmatprep.subr.mxu0 0.0
      %489 = vmatpush2.msra.mxu0 0.0
      %490 = vmatprep.subr.mxu0 0.0
      %491 = vmatpush2.msra.mxu0 0.0
      %492 = vmatprep.subr.mxu0 0.0
      %493 = vmatpush2.msra.mxu0 0.0
      %494 = vmatprep.mubr.f32.mxu0 0.0
      %495 = vmatmul.mubr.f32.gmra.mxu0 %v332
      %v496 = vpop.f32.mrf.mxu0
      %v497 = vadd.f32 0.0, %v496
      %v498 = vpop.f32.mrf.mxu0
      %v499 = vadd.f32 0.0, %v498
      %500 = vdwg.mxu0
      %501 = vmatprep.subr.mxu0 0.0
      %502 = vmatpush1.msra.mxu0 0.0
      %503 = vmatprep.subr.mxu0 0.0
      %504 = vmatpush1.msra.mxu0 0.0
      %505 = vmatprep.subr.mxu0 0.0
      %506 = vmatpush1.msra.mxu0 0.0
      %507 = vmatprep.subr.mxu0 %v351
      %508 = vmatpush1.msra.mxu0 %v348
      %509 = vmatprep.subr.mxu0 %v318
      %510 = vmatpush1.msra.mxu0 %v317
      %511 = vmatprep.subr.mxu0 %v310
      %512 = vmatpush1.msra.mxu0 %v309
      %513 = vmatprep.subr.mxu0 %v302
      %514 = vmatpush1.msra.mxu0 %v301
      %515 = vmatprep.subr.mxu0 %v294
      %516 = vmatpush1.msra.mxu0 %v293
      %517 = vmatprep.subr.mxu0 %v286
      %518 = vmatpush1.msra.mxu0 %v285
      %519 = vmatprep.subr.mxu0 %v278
      %520 = vmatpush1.msra.mxu0 %v277
      %521 = vmatprep.subr.mxu0 %v270
      %522 = vmatpush1.msra.mxu0 %v269
      %523 = vmatprep.subr.mxu0 %v262
      %524 = vmatpush1.msra.mxu0 %v261
      %525 = vmatprep.subr.mxu0 %v254
      %526 = vmatpush1.msra.mxu0 %v253
      %527 = vmatprep.subr.mxu0 %v246
      %528 = vmatpush1.msra.mxu0 %v245
      %529 = vmatprep.subr.mxu0 %v238
      %530 = vmatpush1.msra.mxu0 %v237
      %531 = vmatprep.subr.mxu0 %v230
      %532 = vmatpush1.msra.mxu0 %v229
      %533 = vmatprep.subr.mxu0 0.0
      %534 = vmatpush2.msra.mxu0 0.0
      %535 = vmatprep.subr.mxu0 0.0
      %536 = vmatpush2.msra.mxu0 0.0
      %537 = vmatprep.subr.mxu0 0.0
      %538 = vmatpush2.msra.mxu0 0.0
      %539 = vmatprep.subr.mxu0 0.0
      %540 = vmatpush2.msra.mxu0 0.0
      %541 = vmatprep.subr.mxu0 0.0
      %542 = vmatpush2.msra.mxu0 0.0
      %543 = vmatprep.subr.mxu0 0.0
      %544 = vmatpush2.msra.mxu0 0.0
      %545 = vmatprep.subr.mxu0 0.0
      %546 = vmatpush2.msra.mxu0 0.0
      %547 = vmatprep.subr.mxu0 0.0
      %548 = vmatpush2.msra.mxu0 0.0
      %549 = vmatprep.subr.mxu0 0.0
      %550 = vmatpush2.msra.mxu0 0.0
      %551 = vmatprep.subr.mxu0 0.0
      %552 = vmatpush2.msra.mxu0 0.0
      %553 = vmatprep.subr.mxu0 0.0
      %554 = vmatpush2.msra.mxu0 0.0
      %555 = vmatprep.subr.mxu0 0.0
      %556 = vmatpush2.msra.mxu0 0.0
      %557 = vmatprep.subr.mxu0 0.0
      %558 = vmatpush2.msra.mxu0 0.0
      %559 = vmatprep.subr.mxu0 0.0
      %560 = vmatpush2.msra.mxu0 0.0
      %561 = vmatprep.subr.mxu0 0.0
      %562 = vmatpush2.msra.mxu0 0.0
      %563 = vmatprep.subr.mxu0 0.0
      %564 = vmatpush2.msra.mxu0 0.0
      %565 = vmatprep.mubr.f32.mxu0 0.0
      %566 = vmatmul.mubr.f32.gmra.mxu0 %v332
      %v567 = vpop.f32.mrf.mxu0
      %v568 = vadd.f32 0.0, %v567
      %v569 = vpop.f32.mrf.mxu0
      %v570 = vadd.f32 0.0, %v569
      %571 = vdwg.mxu0
      %572 = vmatprep.subr.mxu0 0.0
      %573 = vmatpush1.msra.mxu0 0.0
      %574 = vmatprep.subr.mxu0 0.0
      %575 = vmatpush1.msra.mxu0 0.0
      %576 = vmatprep.subr.mxu0 0.0
      %577 = vmatpush1.msra.mxu0 0.0
      %578 = vmatprep.subr.mxu0 %v357
      %579 = vmatpush1.msra.mxu0 %v354
      %580 = vmatprep.subr.mxu0 %v320
      %581 = vmatpush1.msra.mxu0 %v319
      %582 = vmatprep.subr.mxu0 %v312
      %583 = vmatpush1.msra.mxu0 %v311
      %584 = vmatprep.subr.mxu0 %v304
      %585 = vmatpush1.msra.mxu0 %v303
      %586 = vmatprep.subr.mxu0 %v296
      %587 = vmatpush1.msra.mxu0 %v295
      %588 = vmatprep.subr.mxu0 %v288
      %589 = vmatpush1.msra.mxu0 %v287
      %590 = vmatprep.subr.mxu0 %v280
      %591 = vmatpush1.msra.mxu0 %v279
      %592 = vmatprep.subr.mxu0 %v272
      %593 = vmatpush1.msra.mxu0 %v271
      %594 = vmatprep.subr.mxu0 %v264
      %595 = vmatpush1.msra.mxu0 %v263
      %596 = vmatprep.subr.mxu0 %v256
      %597 = vmatpush1.msra.mxu0 %v255
      %598 = vmatprep.subr.mxu0 %v248
      %599 = vmatpush1.msra.mxu0 %v247
      %600 = vmatprep.subr.mxu0 %v240
      %601 = vmatpush1.msra.mxu0 %v239
      %602 = vmatprep.subr.mxu0 %v232
      %603 = vmatpush1.msra.mxu0 %v231
      %604 = vmatprep.subr.mxu0 0.0
      %605 = vmatpush2.msra.mxu0 0.0
      %606 = vmatprep.subr.mxu0 0.0
      %607 = vmatpush2.msra.mxu0 0.0
      %608 = vmatprep.subr.mxu0 0.0
      %609 = vmatpush2.msra.mxu0 0.0
      %610 = vmatprep.subr.mxu0 0.0
      %611 = vmatpush2.msra.mxu0 0.0
      %612 = vmatprep.subr.mxu0 0.0
      %613 = vmatpush2.msra.mxu0 0.0
      %614 = vmatprep.subr.mxu0 0.0
      %615 = vmatpush2.msra.mxu0 0.0
      %616 = vmatprep.subr.mxu0 0.0
      %617 = vmatpush2.msra.mxu0 0.0
      %618 = vmatprep.subr.mxu0 0.0
      %619 = vmatpush2.msra.mxu0 0.0
      %620 = vmatprep.subr.mxu0 0.0
      %621 = vmatpush2.msra.mxu0 0.0
      %622 = vmatprep.subr.mxu0 0.0
      %623 = vmatpush2.msra.mxu0 0.0
      %624 = vmatprep.subr.mxu0 0.0
      %625 = vmatpush2.msra.mxu0 0.0
      %626 = vmatprep.subr.mxu0 0.0
      %627 = vmatpush2.msra.mxu0 0.0
      %628 = vmatprep.subr.mxu0 0.0
      %629 = vmatpush2.msra.mxu0 0.0
      %630 = vmatprep.subr.mxu0 0.0
      %631 = vmatpush2.msra.mxu0 0.0
      %632 = vmatprep.subr.mxu0 0.0
      %633 = vmatpush2.msra.mxu0 0.0
      %634 = vmatprep.subr.mxu0 0.0
      %635 = vmatpush2.msra.mxu0 0.0
      %636 = vmatprep.mubr.f32.mxu0 0.0
      %637 = vmatmul.mubr.f32.gmra.mxu0 %v332
      %v638 = vpop.f32.mrf.mxu0
      %v639 = vadd.f32 0.0, %v638
      %v640 = vpop.f32.mrf.mxu0
      %v641 = vadd.f32 0.0, %v640
      %642 = vdwg.mxu0
      %v643 = vtanh.pop %v426
      %v644 = vtanh.pop %v428
      %v645 = vtanh.pop %v497
      %v646 = vtanh.pop %v499
      %v647 = vtanh.pop %v568
      %v648 = vtanh.pop %v570
      %v649 = vtanh.pop %v639
      %v650 = vtanh.pop %v641
      %v651 = vld [vmem:[%s208] sm:$0xff]
      %v652 = vld [vmem:[%s208 + $0x8] sm:$0xff]
      %v653 = vld [vmem:[%s208 + $0x10] sm:$0xff]
      %v654 = vld [vmem:[%s208 + $0x18] sm:$0xff]
      %v655 = vld [vmem:[%s208 + $0x20] sm:$0xff]
      %v656 = vld [vmem:[%s208 + $0x28] sm:$0xff]
      %v657 = vld [vmem:[%s208 + $0x30] sm:$0xff]
      %v658 = vld [vmem:[%s208 + $0x38] sm:$0xff]
      %v659 = vsub.f32 %v651, %v643
      %v660 = vsub.f32 %v652, %v644
      %v661 = vsub.f32 %v653, %v645
      %v662 = vsub.f32 %v654, %v646
      %v663 = vsub.f32 %v655, %v647
      %v664 = vsub.f32 %v656, %v648
      %v665 = vsub.f32 %v657, %v649
      %v666 = vsub.f32 %v658, %v650
      %v667 = vmul.f32 %v659, %v659
      %v668 = vmul.f32 %v660, %v660
      %v669 = vmul.f32 %v661, %v661
      %v670 = vmul.f32 %v662, %v662
      %v671 = vmul.f32 %v663, %v663
      %v672 = vmul.f32 %v664, %v664
      %v673 = vmul.f32 %v665, %v665
      %v674 = vmul.f32 %v666, %v666
      %v675 = vadd.f32 %v667, %v668
      %v676 = vadd.f32 %v669, %v670
      %v677 = vadd.f32 %v671, %v672
      %v678 = vadd.f32 %v673, %v674
      %v679 = vadd.f32 %v675, %v676
      %v680 = vadd.f32 %v677, %v678
      %v681 = vadd.f32 %v679, %v680
      %v682 = vld [vmem:[#allocation2] sm:$0xff]
      %v683 = vadd.f32 %v682, %v681
      %684 = vst [vmem:[#allocation2] sm:$0xff] %v683
      // Predicated region
      $region37: #{tpu_custom_call.1} parent=31 // pred_check
        %p685 = pneg %p214
      $region38: #{tpu_custom_call.1} parent=31 // pred_check_branch
        %687 = sbr.rel (%p685) target = $region40
      $region39: #{tpu_custom_call.1} parent=31 // pred_region
        %v688 = vld [vmem:[#allocation2] sm:$0xff]
        %689 = vadd.xlane.f32.xlu0 %v688
        %v690 = vpop.xlane.xlu0 %689
        %v691 = vmul.f32 %v690, 0.0009765625
        %v692 = vld [vmem:[%s199] sm:$0xff]
        %v693 = vmul.f32 %v692, %v692
        %v694 = vsel %vm330, %v693, 0.0
        %695 = vadd.xlane.f32.xlu0 %v694
        %v696 = vpop.xlane.xlu0 %695
        %v697 = vsub.f32 %v696, 1.0
        %v698 = vsub.f32 %v697, 100.0
        %v699 = vmul.f32 %v698, %v698
        %v700 = vmul.f32 %v699, 0.001
        %v701 = vadd.f32 %v691, %v700
        %vm702 = vcmask 7168
        %703 = vst.msk [vmem:[%s213] sm:$0xff] %vm702, %v701
      $region40: #{tpu_custom_call.1} parent=31 // pred_fallthru
        _
      %p704 = scmp.lt.s32.totalorder %s18, 1
      %s705 = scalar_select %p704, %s18, 1
      %s706 = smul.addr %s705, 8
      %s707 = scalar_lea.vmem %s3, %s706
      // Predicated region
      $region41: #{tpu_custom_call.1} parent=31 // pred_check
        %p708 = pneg %p119
      $region42: #{tpu_custom_call.1} parent=31 // pred_check_branch
        %710 = sbr.rel (%p708) target = $region44
      $region43: #{tpu_custom_call.1} parent=31 // pred_region
        _
      $region44: #{tpu_custom_call.1} parent=31 // pred_fallthru
        _
    $region32: #{tpu_custom_call.1} parent=5 // pred_fallthru
      _
    %p711 = scmp.le.s32.totalorder 2, %s9
    // Predicated region
    $region45: #{tpu_custom_call.1} parent=5 // pred_check
      %p712 = pneg %p711
    $region46: #{tpu_custom_call.1} parent=5 // pred_check_branch
      %714 = sbr.rel (%p712) target = $region48
    $region47: #{tpu_custom_call.1} parent=5 // pred_region
      %s715 = ssub.s32 %s9, 2
      // Predicated region
      $region49: #{tpu_custom_call.1} parent=47 // pred_check
        %p716 = pneg %p125
      $region50: #{tpu_custom_call.1} parent=47 // pred_check_branch
        %718 = sbr.rel (%p716) target = $region52
      $region51: #{tpu_custom_call.1} parent=47 // pred_region
        %p719 = scmp.lt.s32.totalorder %s20, 1
        %s720 = scalar_select %p719, %s20, 1
        %s721 = smul.addr %s720, 8
        %s722 = scalar_lea.vmem %s3, %s721
      $region52: #{tpu_custom_call.1} parent=47 // pred_fallthru
        _
    $region48: #{tpu_custom_call.1} parent=5 // pred_fallthru
      _
  $region6: #{tpu_custom_call.1} parent=0 // loop_footer
    %s13 = sadd.s32 1, %s9
  $region7: #{tpu_custom_call.1} parent=0 // loop_footer_branch
    %8 = sbr.rel target = $region3
  $region8: #{tpu_custom_call.1} parent=0 // loop_exit
    _

</llo_original>
